<compile_context>
chip_gen: v5e
topology: v5e:2x2
jax: 0.10.0
libtpu: 0.0.40
codegen_flags: <defaults>
</compile_context>

<pallas_src>
import functools

import jax
import jax.numpy as jnp
from jax.experimental import pallas as pl
from jax.experimental.pallas import tpu as pltpu

LANE = 128      # lane width (last-dim tile)
SUBLANE = 8     # sublane width (second-to-last-dim tile)


def _cdiv(a, b):
    return (a + b - 1) // b


def _round_up(n, m):
    return _cdiv(n, m) * m


def _pick_batch_tile(B, block_b):
    """Pick a sublane-aligned batch tile.

    Guarantees >=2 grid tiles whenever B > one sublane group (v7x megacore), caps the
    tile near block_b, and keeps the ragged remainder <= one tile's worth (handled by
    Pallas partial blocks, so no explicit batch padding is ever materialized)."""
    if B <= SUBLANE:
        return B                                   # single tiny tile, full extent
    n_tiles = max(2, _cdiv(B, max(block_b, SUBLANE)))
    tb = _round_up(_cdiv(B, n_tiles), SUBLANE)
    return min(tb, _round_up(B, SUBLANE))


def dqn_kernel(x_ref, w1_ref, b1_ref, w2_ref, b2_ref, w3_ref, b3_ref, o_ref):
    # Layer 1: (TB, d_in) @ (d_in, H) — cast x to bf16 in-kernel, f32 MXU accumulate.
    x = x_ref[...].astype(w1_ref.dtype)
    h1 = jnp.dot(x, w1_ref[...], preferred_element_type=jnp.float32)
    h1 = jnp.maximum(h1 + b1_ref[...], 0.0)
    # Layer 2: (TB, H) @ (H, H)
    h2 = jnp.dot(h1.astype(w2_ref.dtype), w2_ref[...],
                 preferred_element_type=jnp.float32)
    h2 = jnp.maximum(h2 + b2_ref[...], 0.0)
    # Layer 3: (TB, H) @ (H, d_out) — narrow, unpadded output store.
    out = jnp.dot(h2.astype(w3_ref.dtype), w3_ref[...],
                  preferred_element_type=jnp.float32)
    o_ref[...] = (out + b3_ref[...]).astype(o_ref.dtype)


@functools.partial(jax.jit, static_argnames=("block_b",))
def dqn_forward(x, params, block_b=1024):
    """x: (B, input_dim) f32.  params: (w1,b1,w2,b2,w3,b3), weights stored (in, out)."""
    w1, b1, w2, b2, w3, b3 = params
    B, d_in = x.shape
    hidden = w1.shape[1]
    d_out = w3.shape[1]
    cdt = jnp.bfloat16  # MXU operand dtype (f32 accumulation inside the kernel)

    tb = _pick_batch_tile(B, block_b)
    grid = (_cdiv(B, tb),)

    # Weights/biases: tiny one-time casts; kept in natural (unpadded) shapes.
    w1_c = w1.astype(cdt)
    w2_c = w2.astype(cdt)
    w3_c = w3.astype(cdt)
    b1_c = b1.astype(jnp.float32)
    b2_c = b2.astype(jnp.float32)
    b3_c = b3.astype(jnp.float32)

    resident = lambda shape: pl.BlockSpec(shape, lambda i: (0, 0))
    return pl.pallas_call(
        dqn_kernel,
        out_shape=jax.ShapeDtypeStruct((B, d_out), jnp.float32),
        grid_spec=pltpu.PrefetchScalarGridSpec(
            num_scalar_prefetch=0,
            grid=grid,
            in_specs=[
                pl.BlockSpec((tb, d_in), lambda i: (i, 0)),    # x: pipelined over batch
                resident(w1_c.shape), resident(b1_c.shape),    # weights/biases: VMEM-resident
                resident(w2_c.shape), resident(b2_c.shape),
                resident(w3_c.shape), resident(b3_c.shape),
            ],
            out_specs=pl.BlockSpec((tb, d_out), lambda i: (i, 0)),
        ),
        compiler_params=pltpu.CompilerParams(
            dimension_semantics=("parallel",),   # batch tiles independent -> megacore on v7x
        ),
    )(x, w1_c, b1_c, w2_c, b2_c, w3_c, b3_c)


def init_dqn_params(key, input_dim, output_dim, hidden=128):
    """Mimics nn.Linear default init (U[-1/sqrt(fan_in), 1/sqrt(fan_in)]).
    Weights stored transposed relative to PyTorch, i.e. (in, out)."""
    def linear(key, fan_in, fan_out):
        kw, kb = jax.random.split(key)
        bound = 1.0 / jnp.sqrt(fan_in)
        w = jax.random.uniform(kw, (fan_in, fan_out), jnp.float32, -bound, bound)
        b = jax.random.uniform(kb, (1, fan_out), jnp.float32, -bound, bound)
        return w, b

    k1, k2, k3 = jax.random.split(key, 3)
    w1, b1 = linear(k1, input_dim, hidden)
    w2, b2 = linear(k2, hidden, hidden)
    w3, b3 = linear(k3, hidden, output_dim)
    return (w1, b1, w2, b2, w3, b3)


def dqn_reference(x, params, dtype=jnp.float32):
    """Pure-JAX reference; dtype controls matmul-operand precision."""
    w1, b1, w2, b2, w3, b3 = params
    c = lambda a: a.astype(dtype)
    h1 = jnp.maximum(jnp.dot(c(x), c(w1), preferred_element_type=jnp.float32) + b1, 0.0)
    h2 = jnp.maximum(jnp.dot(c(h1), c(w2), preferred_element_type=jnp.float32) + b2, 0.0)
    return jnp.dot(c(h2), c(w3), preferred_element_type=jnp.float32) + b3


if __name__ == "__main__":
    batch, input_dim, output_dim = 8, 32, 8

    key = jax.random.PRNGKey(0)
    kx, kp, kx2 = jax.random.split(key, 3)
    x = jax.random.normal(kx, (batch, input_dim), jnp.float32)
    params = init_dqn_params(kp, input_dim, output_dim)

    out = jax.block_until_ready(dqn_forward(x, params))
    assert out.shape == (batch, output_dim)
    # Same-numerics reference (bf16 operands, f32 accumulate) -> tight tolerance.
    assert jnp.allclose(out, dqn_reference(x, params, jnp.bfloat16), atol=1e-3, rtol=1e-3)
    # Full-f32 reference -> loose tolerance covering bf16 operand rounding.
    assert jnp.allclose(out, dqn_reference(x, params, jnp.float32), atol=3e-2, rtol=3e-2)

    # Non-multiple larger batch exercises >=2 batch tiles + the ragged final tile.
    x2 = jax.random.normal(kx2, (300, input_dim), jnp.float32)
    out2 = jax.block_until_ready(dqn_forward(x2, params))
    assert out2.shape == (300, output_dim)
    assert jnp.allclose(out2, dqn_reference(x2, params, jnp.bfloat16), atol=1e-3, rtol=1e-3)

    print("KERNEL_OK")
</pallas_src>

<mosaic_0001>
module attributes {stable_mosaic.version = 11 : i64} {
  func.func @dqn_kernel(%arg0: i32, %arg1: memref<8x32xf32, #tpu.memory_space<vmem>>, %arg2: memref<32x128xbf16, #tpu.memory_space<vmem>>, %arg3: memref<1x128xf32, #tpu.memory_space<vmem>>, %arg4: memref<128x128xbf16, #tpu.memory_space<vmem>>, %arg5: memref<1x128xf32, #tpu.memory_space<vmem>>, %arg6: memref<128x8xbf16, #tpu.memory_space<vmem>>, %arg7: memref<1x8xf32, #tpu.memory_space<vmem>>, %arg8: memref<8x8xf32, #tpu.memory_space<vmem>>) attributes {dimension_semantics = [#tpu.dimension_semantics<parallel>], iteration_bounds = array<i64: 1>, scalar_prefetch = 0 : i64, scratch_operands = 0 : i64, tpu.core_type = #tpu.core_type<tc>, window_params = [{transform_indices = @transform_0, window_bounds = array<i64: 8, 32>}, {pipeline_mode = #tpu.pipeline_mode<synchronous>, transform_indices = @transform_1, window_bounds = array<i64: 32, 128>}, {pipeline_mode = #tpu.pipeline_mode<synchronous>, transform_indices = @transform_2, window_bounds = array<i64: 1, 128>}, {pipeline_mode = #tpu.pipeline_mode<synchronous>, transform_indices = @transform_3, window_bounds = array<i64: 128, 128>}, {pipeline_mode = #tpu.pipeline_mode<synchronous>, transform_indices = @transform_4, window_bounds = array<i64: 1, 128>}, {pipeline_mode = #tpu.pipeline_mode<synchronous>, transform_indices = @transform_5, window_bounds = array<i64: 128, 8>}, {pipeline_mode = #tpu.pipeline_mode<synchronous>, transform_indices = @transform_6, window_bounds = array<i64: 1, 8>}, {transform_indices = @transform_7, window_bounds = array<i64: 8, 8>}]} {
    %c0 = arith.constant 0 : index
    %c0_0 = arith.constant 0 : index
    %0 = vector.load %arg1[%c0, %c0_0] : memref<8x32xf32, #tpu.memory_space<vmem>>, vector<8x32xf32>
    %1 = arith.truncf %0 : vector<8x32xf32> to vector<8x32xbf16>
    %c0_1 = arith.constant 0 : index
    %c0_2 = arith.constant 0 : index
    %2 = vector.load %arg2[%c0_1, %c0_2] : memref<32x128xbf16, #tpu.memory_space<vmem>>, vector<32x128xbf16>
    %cst = arith.constant dense<0.000000e+00> : vector<8x128xf32>
    %3 = tpu.matmul %1, %2, %cst {dimension_numbers = #tpu.dot_dimension_numbers<[1], [0], [0], [1], [0, 0, 1, 1], [], []>} : vector<8x32xbf16>, vector<32x128xbf16>, vector<8x128xf32> -> vector<8x128xf32>
    %c0_3 = arith.constant 0 : index
    %c0_4 = arith.constant 0 : index
    %4 = vector.load %arg3[%c0_3, %c0_4] : memref<1x128xf32, #tpu.memory_space<vmem>>, vector<1x128xf32>
    %5 = vector.broadcast %4 : vector<1x128xf32> to vector<8x128xf32>
    %6 = arith.addf %3, %5 : vector<8x128xf32>
    %cst_5 = arith.constant 0.000000e+00 : f32
    %7 = vector.broadcast %cst_5 : f32 to vector<8x128xf32>
    %8 = arith.maximumf %6, %7 : vector<8x128xf32>
    %9 = arith.truncf %8 : vector<8x128xf32> to vector<8x128xbf16>
    %c0_6 = arith.constant 0 : index
    %c0_7 = arith.constant 0 : index
    %10 = vector.load %arg4[%c0_6, %c0_7] : memref<128x128xbf16, #tpu.memory_space<vmem>>, vector<128x128xbf16>
    %cst_8 = arith.constant dense<0.000000e+00> : vector<8x128xf32>
    %11 = tpu.matmul %9, %10, %cst_8 {dimension_numbers = #tpu.dot_dimension_numbers<[1], [0], [0], [1], [0, 0, 1, 1], [], []>} : vector<8x128xbf16>, vector<128x128xbf16>, vector<8x128xf32> -> vector<8x128xf32>
    %c0_9 = arith.constant 0 : index
    %c0_10 = arith.constant 0 : index
    %12 = vector.load %arg5[%c0_9, %c0_10] : memref<1x128xf32, #tpu.memory_space<vmem>>, vector<1x128xf32>
    %13 = vector.broadcast %12 : vector<1x128xf32> to vector<8x128xf32>
    %14 = arith.addf %11, %13 : vector<8x128xf32>
    %cst_11 = arith.constant 0.000000e+00 : f32
    %15 = vector.broadcast %cst_11 : f32 to vector<8x128xf32>
    %16 = arith.maximumf %14, %15 : vector<8x128xf32>
    %17 = arith.truncf %16 : vector<8x128xf32> to vector<8x128xbf16>
    %c0_12 = arith.constant 0 : index
    %c0_13 = arith.constant 0 : index
    %18 = vector.load %arg6[%c0_12, %c0_13] : memref<128x8xbf16, #tpu.memory_space<vmem>>, vector<128x8xbf16>
    %cst_14 = arith.constant dense<0.000000e+00> : vector<8x8xf32>
    %19 = tpu.matmul %17, %18, %cst_14 {dimension_numbers = #tpu.dot_dimension_numbers<[1], [0], [0], [1], [0, 0, 1, 1], [], []>} : vector<8x128xbf16>, vector<128x8xbf16>, vector<8x8xf32> -> vector<8x8xf32>
    %c0_15 = arith.constant 0 : index
    %c0_16 = arith.constant 0 : index
    %20 = vector.load %arg7[%c0_15, %c0_16] : memref<1x8xf32, #tpu.memory_space<vmem>>, vector<1x8xf32>
    %21 = vector.broadcast %20 : vector<1x8xf32> to vector<8x8xf32>
    %22 = arith.addf %19, %21 : vector<8x8xf32>
    %c0_17 = arith.constant 0 : index
    %c0_18 = arith.constant 0 : index
    %23 = vector.load %arg8[%c0_17, %c0_18] : memref<8x8xf32, #tpu.memory_space<vmem>>, vector<8x8xf32>
    tpu.vector_store %arg8[%c0_17, %c0_18], %22 {strides = array<i32>} : memref<8x8xf32, #tpu.memory_space<vmem>>, vector<8x8xf32>,
    return
  }
  func.func @transform_0(%arg0: i32) -> (i32, i32) {
    %c0_i32 = arith.constant 0 : i32
    %c0_i32_0 = arith.constant 0 : i32
    return %arg0, %c0_i32 : i32, i32
  }
  func.func @transform_1(%arg0: i32) -> (i32, i32) {
    %c0_i32 = arith.constant 0 : i32
    %c0_i32_0 = arith.constant 0 : i32
    %c0_i32_1 = arith.constant 0 : i32
    return %c0_i32, %c0_i32_0 : i32, i32
  }
  func.func @transform_2(%arg0: i32) -> (i32, i32) {
    %c0_i32 = arith.constant 0 : i32
    %c0_i32_0 = arith.constant 0 : i32
    %c0_i32_1 = arith.constant 0 : i32
    return %c0_i32, %c0_i32_0 : i32, i32
  }
  func.func @transform_3(%arg0: i32) -> (i32, i32) {
    %c0_i32 = arith.constant 0 : i32
    %c0_i32_0 = arith.constant 0 : i32
    %c0_i32_1 = arith.constant 0 : i32
    return %c0_i32, %c0_i32_0 : i32, i32
  }
  func.func @transform_4(%arg0: i32) -> (i32, i32) {
    %c0_i32 = arith.constant 0 : i32
    %c0_i32_0 = arith.constant 0 : i32
    %c0_i32_1 = arith.constant 0 : i32
    return %c0_i32, %c0_i32_0 : i32, i32
  }
  func.func @transform_5(%arg0: i32) -> (i32, i32) {
    %c0_i32 = arith.constant 0 : i32
    %c0_i32_0 = arith.constant 0 : i32
    %c0_i32_1 = arith.constant 0 : i32
    return %c0_i32, %c0_i32_0 : i32, i32
  }
  func.func @transform_6(%arg0: i32) -> (i32, i32) {
    %c0_i32 = arith.constant 0 : i32
    %c0_i32_0 = arith.constant 0 : i32
    %c0_i32_1 = arith.constant 0 : i32
    return %c0_i32, %c0_i32_0 : i32, i32
  }
  func.func @transform_7(%arg0: i32) -> (i32, i32) {
    %c0_i32 = arith.constant 0 : i32
    %c0_i32_0 = arith.constant 0 : i32
    return %arg0, %c0_i32 : i32, i32
  }
}

</mosaic_0001>

<llo_original>
// kernel: dqn_forward.1
$region0: #{dqn_forward.1}
  #allocation0 [shape = 'u32[]', space=smem, size = 0x4, offset = 0x4, fixed_abs, tag = 'smem constant byte address 0x4 - core index']
  #allocation1 [shape = 'u32[72,128]{1,0:T(1,128)}', space=vmem, size = 0x9000, scoped, tag = 'internal scratch']
  %s0 = inlined_call_operand.vmem [shape: f32[8,32], index: 0, kind: input, shape index: {}]
  %s1 = inlined_call_operand.vmem [shape: bf16[32,128], index: 1, kind: input, shape index: {}]
  %s2 = inlined_call_operand.vmem [shape: f32[1,128], index: 2, kind: input, shape index: {}]
  %s3 = inlined_call_operand.vmem [shape: bf16[128,128], index: 3, kind: input, shape index: {}]
  %s4 = inlined_call_operand.vmem [shape: f32[1,128], index: 4, kind: input, shape index: {}]
  %s5 = inlined_call_operand.vmem [shape: bf16[128,8], index: 5, kind: input, shape index: {}]
  %s6 = inlined_call_operand.vmem [shape: f32[1,8], index: 6, kind: input, shape index: {}]
  %s7 = inlined_call_operand.hbm [shape: f32[8,8], index: 7, kind: output, shape index: {}]
  %s8 = sld [smem:[#allocation0]]
  $region38: #{dqn_forward.1} parent=0
    _
  %s10 = ssub.s32 1, %s8
  %s11 = scalar_select 0, %s10, %s8
  $region1: #{dqn_forward.1} parent=0
    #allocation2 [shape = 'u8[4096]{0}', space=vmem, size = 0x1000, scoped, tag = 'output window, operand 0, single buffered']
    #allocation3 [shape = 's32[1]{0}', space=sflag, size = 0x4, scoped, tag = 'scoped memory for dqn_forward.1']
    %12 = vsyncpa [#allocation3], 0
    // Predicated region
    $region2: #{dqn_forward.1} parent=1 // pred_check
      _
    $region3: #{dqn_forward.1} parent=1 // pred_check_branch
      %14 = sbr.rel (0) target = $region5
    $region4: #{dqn_forward.1} parent=1 // pred_region
      _
    $region5: #{dqn_forward.1} parent=1 // pred_fallthru
      _
    // Predicated region
    $region6: #{dqn_forward.1} parent=1 // pred_check
      _
    $region7: #{dqn_forward.1} parent=1 // pred_check_branch
      %16 = sbr.rel (0) target = $region9
    $region8: #{dqn_forward.1} parent=1 // pred_region
      _
    $region9: #{dqn_forward.1} parent=1 // pred_fallthru
      _
    // Predicated region
    $region10: #{dqn_forward.1} parent=1 // pred_check
      _
    $region11: #{dqn_forward.1} parent=1 // pred_check_branch
      %18 = sbr.rel (0) target = $region13
    $region12: #{dqn_forward.1} parent=1 // pred_region
      _
    $region13: #{dqn_forward.1} parent=1 // pred_fallthru
      _
    // Predicated region
    $region14: #{dqn_forward.1} parent=1 // pred_check
      _
    $region15: #{dqn_forward.1} parent=1 // pred_check_branch
      %20 = sbr.rel (0) target = $region17
    $region16: #{dqn_forward.1} parent=1 // pred_region
      _
    $region17: #{dqn_forward.1} parent=1 // pred_fallthru
      _
    // Predicated region
    $region18: #{dqn_forward.1} parent=1 // pred_check
      _
    $region19: #{dqn_forward.1} parent=1 // pred_check_branch
      %22 = sbr.rel (0) target = $region21
    $region20: #{dqn_forward.1} parent=1 // pred_region
      _
    $region21: #{dqn_forward.1} parent=1 // pred_fallthru
      _
    // Predicated region
    $region22: #{dqn_forward.1} parent=1 // pred_check
      _
    $region23: #{dqn_forward.1} parent=1 // pred_check_branch
      %24 = sbr.rel (0) target = $region25
    $region24: #{dqn_forward.1} parent=1 // pred_region
      _
    $region25: #{dqn_forward.1} parent=1 // pred_fallthru
      _
    // Predicated region
    $region26: #{dqn_forward.1} parent=1 // pred_check
      _
    $region27: #{dqn_forward.1} parent=1 // pred_check_branch
      %26 = sbr.rel (0) target = $region29
    $region28: #{dqn_forward.1} parent=1 // pred_region
      _
    $region29: #{dqn_forward.1} parent=1 // pred_fallthru
      _
    %v28 = vld [vmem:[%s0] sm:$0xff]
    %v29 = vpack.c.bf16 %v28, %v28
    %v30 = vld [vmem:[%s1] sm:$0xf]
    %v31 = vld [vmem:[%s1 + $0x4] sm:$0xf]
    %v32 = vld [vmem:[%s1 + $0x8] sm:$0xf]
    %v33 = vld [vmem:[%s1 + $0xc] sm:$0xf]
    %v34 = vld [vmem:[%s2] sm:$0x1]
    %v36 = vperm.slane %v34, 0
    %v42 = vunpack.c.l.b16 %v30
    %v43 = vunpack.c.l.b16 %v31
    %v44 = vunpack.c.l.b16 %v32
    %v45 = vunpack.c.l.b16 %v33
    %v46 = vpack.c.b16 %v43, %v42
    %v47 = vpack.c.b16 %v45, %v44
    %vm50 = vcmask 261120
    %v52 = vsel %vm50, %v29, 0
    %54 = vmatpush.bf16.msra.mxu0 0
    %55 = vmatpush.bf16.msra.mxu0 0
    %56 = vmatpush.bf16.msra.mxu0 0
    %57 = vmatpush.bf16.msra.mxu0 0
    %58 = vmatpush.bf16.msra.mxu0 0
    %59 = vmatpush.bf16.msra.mxu0 0
    %60 = vmatpush.bf16.msra.mxu0 %v47
    %61 = vmatpush.bf16.msra.mxu0 %v46
    %62 = vmatmul.bf16.gmra.mxu0 %v52
    %v63 = vpop.f32.mrf.mxu0
    %v64 = vadd.f32 %v36, %v63
    %v65 = vpop.f32.mrf.mxu0
    %66 = vdwg.mxu0
    %v67 = vmax.f32 %v64, 0.0
    %v68 = vpack.c.bf16 %v67, %v67
    %v69 = vld [vmem:[%s3] sm:$0xf]
    %v70 = vld [vmem:[%s3 + $0x4] sm:$0xf]
    %v71 = vld [vmem:[%s3 + $0x8] sm:$0xf]
    %v72 = vld [vmem:[%s3 + $0xc] sm:$0xf]
    %v73 = vld [vmem:[%s3 + $0x10] sm:$0xf]
    %v74 = vld [vmem:[%s3 + $0x14] sm:$0xf]
    %v75 = vld [vmem:[%s3 + $0x18] sm:$0xf]
    %v76 = vld [vmem:[%s3 + $0x1c] sm:$0xf]
    %v77 = vld [vmem:[%s3 + $0x20] sm:$0xf]
    %v78 = vld [vmem:[%s3 + $0x24] sm:$0xf]
    %v79 = vld [vmem:[%s3 + $0x28] sm:$0xf]
    %v80 = vld [vmem:[%s3 + $0x2c] sm:$0xf]
    %v81 = vld [vmem:[%s3 + $0x30] sm:$0xf]
    %v82 = vld [vmem:[%s3 + $0x34] sm:$0xf]
    %v83 = vld [vmem:[%s3 + $0x38] sm:$0xf]
    %v84 = vld [vmem:[%s3 + $0x3c] sm:$0xf]
    %v85 = vld [vmem:[%s4] sm:$0x1]
    %v87 = vperm.slane %v85, 0
    %v105 = vunpack.c.l.b16 %v69
    %v106 = vunpack.c.l.b16 %v70
    %v107 = vunpack.c.l.b16 %v71
    %v108 = vunpack.c.l.b16 %v72
    %v109 = vunpack.c.l.b16 %v73
    %v110 = vunpack.c.l.b16 %v74
    %v111 = vunpack.c.l.b16 %v75
    %v112 = vunpack.c.l.b16 %v76
    %v113 = vunpack.c.l.b16 %v77
    %v114 = vunpack.c.l.b16 %v78
    %v115 = vunpack.c.l.b16 %v79
    %v116 = vunpack.c.l.b16 %v80
    %v117 = vunpack.c.l.b16 %v81
    %v118 = vunpack.c.l.b16 %v82
    %v119 = vunpack.c.l.b16 %v83
    %v120 = vunpack.c.l.b16 %v84
    %v121 = vpack.c.b16 %v106, %v105
    %v122 = vpack.c.b16 %v108, %v107
    %v123 = vpack.c.b16 %v110, %v109
    %v124 = vpack.c.b16 %v112, %v111
    %v125 = vpack.c.b16 %v114, %v113
    %v126 = vpack.c.b16 %v116, %v115
    %v127 = vpack.c.b16 %v118, %v117
    %v128 = vpack.c.b16 %v120, %v119
    %137 = vmatpush.bf16.msra.mxu0 %v128
    %138 = vmatpush.bf16.msra.mxu0 %v127
    %139 = vmatpush.bf16.msra.mxu0 %v126
    %140 = vmatpush.bf16.msra.mxu0 %v125
    %141 = vmatpush.bf16.msra.mxu0 %v124
    %142 = vmatpush.bf16.msra.mxu0 %v123
    %143 = vmatpush.bf16.msra.mxu0 %v122
    %144 = vmatpush.bf16.msra.mxu0 %v121
    %145 = vmatmul.bf16.gmra.mxu0 %v68
    %v146 = vpop.f32.mrf.mxu0
    %v147 = vadd.f32 %v87, %v146
    %v148 = vpop.f32.mrf.mxu0
    %149 = vdwg.mxu0
    %v150 = vmax.f32 %v147, 0.0
    %v151 = vpack.c.bf16 %v150, %v150
    %v152 = vld [vmem:[%s5] sm:$0xf]
    %v153 = vld [vmem:[%s5 + $0x4] sm:$0xf]
    %v154 = vld [vmem:[%s5 + $0x8] sm:$0xf]
    %v155 = vld [vmem:[%s5 + $0xc] sm:$0xf]
    %v156 = vld [vmem:[%s5 + $0x10] sm:$0xf]
    %v157 = vld [vmem:[%s5 + $0x14] sm:$0xf]
    %v158 = vld [vmem:[%s5 + $0x18] sm:$0xf]
    %v159 = vld [vmem:[%s5 + $0x1c] sm:$0xf]
    %v160 = vld [vmem:[%s5 + $0x20] sm:$0xf]
    %v161 = vld [vmem:[%s5 + $0x24] sm:$0xf]
    %v162 = vld [vmem:[%s5 + $0x28] sm:$0xf]
    %v163 = vld [vmem:[%s5 + $0x2c] sm:$0xf]
    %v164 = vld [vmem:[%s5 + $0x30] sm:$0xf]
    %v165 = vld [vmem:[%s5 + $0x34] sm:$0xf]
    %v166 = vld [vmem:[%s5 + $0x38] sm:$0xf]
    %v167 = vld [vmem:[%s5 + $0x3c] sm:$0xf]
    %v168 = vld [vmem:[%s6] sm:$0x1]
    %v170 = vperm.slane %v168, 0
    %v188 = vunpack.c.l.b16 %v152
    %v189 = vunpack.c.l.b16 %v153
    %v190 = vunpack.c.l.b16 %v154
    %v191 = vunpack.c.l.b16 %v155
    %v192 = vunpack.c.l.b16 %v156
    %v193 = vunpack.c.l.b16 %v157
    %v194 = vunpack.c.l.b16 %v158
    %v195 = vunpack.c.l.b16 %v159
    %v196 = vunpack.c.l.b16 %v160
    %v197 = vunpack.c.l.b16 %v161
    %v198 = vunpack.c.l.b16 %v162
    %v199 = vunpack.c.l.b16 %v163
    %v200 = vunpack.c.l.b16 %v164
    %v201 = vunpack.c.l.b16 %v165
    %v202 = vunpack.c.l.b16 %v166
    %v203 = vunpack.c.l.b16 %v167
    %v204 = vpack.c.b16 %v189, %v188
    %v205 = vpack.c.b16 %v191, %v190
    %v206 = vpack.c.b16 %v193, %v192
    %v207 = vpack.c.b16 %v195, %v194
    %v208 = vpack.c.b16 %v197, %v196
    %v209 = vpack.c.b16 %v199, %v198
    %v210 = vpack.c.b16 %v201, %v200
    %v211 = vpack.c.b16 %v203, %v202
    %220 = vmatpush.bf16.msra.mxu0 %v211
    %221 = vmatpush.bf16.msra.mxu0 %v210
    %222 = vmatpush.bf16.msra.mxu0 %v209
    %223 = vmatpush.bf16.msra.mxu0 %v208
    %224 = vmatpush.bf16.msra.mxu0 %v207
    %225 = vmatpush.bf16.msra.mxu0 %v206
    %226 = vmatpush.bf16.msra.mxu0 %v205
    %227 = vmatpush.bf16.msra.mxu0 %v204
    %228 = vmatmul.bf16.gmra.mxu0 %v151
    %v229 = vpop.f32.mrf.mxu0
    %v230 = vadd.f32 %v170, %v229
    %v231 = vpop.f32.mrf.mxu0
    %232 = vdwg.mxu0
    %vm233 = vcmask 64512
    %234 = vst.msk [vmem:[#allocation2] sm:$0xff] %vm233, %v230
    // Predicated region
    $region30: #{dqn_forward.1} parent=1 // pred_check
      _
    $region31: #{dqn_forward.1} parent=1 // pred_check_branch
      %236 = sbr.rel (0) target = $region33
    $region32: #{dqn_forward.1} parent=1 // pred_region
      %238 = vsyncadd [#allocation3], 0
      %s240 = sshll.u32 [#allocation2], 4
      %s241 = int_to_ptr.vmem [resolvable:$true] %s240
      %s242 = sshll.u32 %s7, 4
      %s243 = int_to_ptr.hbm [resolvable:$true] %s242
      %245 = dma.vmem_to_hbm [thread:$0]  %s241, 128, %s243, [#allocation3]
    $region33: #{dqn_forward.1} parent=1 // pred_fallthru
      _
    // Predicated region
    $region34: #{dqn_forward.1} parent=1 // pred_check
      _
    $region35: #{dqn_forward.1} parent=1 // pred_check_branch
      %247 = sbr.rel (0) target = $region37
    $region36: #{dqn_forward.1} parent=1 // pred_region
      %249 = dma.done [#allocation3], 128
    $region37: #{dqn_forward.1} parent=1 // pred_fallthru
      _
    %250 = vsyncpa [#allocation3], 1

</llo_original>
